<compile_context>
chip_gen: v5e
topology: v5e:2x2
jax: 0.10.0
libtpu: 0.0.40
codegen_flags: <defaults>
</compile_context>

<pallas_src>
import functools

import jax
import jax.numpy as jnp
from jax.experimental import pallas as pl
from jax.experimental.pallas import tpu as pltpu


def _mlp_kernel(xT_ref, w1c0_ref, w1c1_ref, b1_ref, w23_ref, b23_ref, o_ref):
    # Transposed layout: hidden units on sublanes, batch points on lanes.
    x0 = xT_ref[0:1, :]                                    # (1, TM) feature 0
    x1 = xT_ref[1:2, :]                                    # (1, TM) feature 1

    # Layer 1: K=2 contraction as a VPU outer product (no MXU), tanh on EUP.
    h1 = jnp.tanh(w1c0_ref[...] * x0 + w1c1_ref[...] * x1 + b1_ref[...])   # (Hp, TM)

    # Fused layers 2+3: single (Hp,1) column -> sublane reduction on the XLU.
    p = jnp.sum(h1 * w23_ref[...], axis=0, keepdims=True) + b23_ref[...]   # (1, TM)

    # Lane-dense store.
    o_ref[...] = -jnp.exp(p)


def _round_up(v, m):
    return ((v + m - 1) // m) * m


@functools.partial(jax.jit, static_argnames=("tile_m",))
def matric_potential_net(x, w1, b1, w2, b2, w3, b3, *, tile_m=1024):
    """x: (N, 2).  Weights are stored as (in, out) = transpose of PyTorch's
    (out, in):  w1 (2,H), b1 (1,H), w2 (H,H), b2 (1,H), w3 (H,1), b3 (1,1)."""
    N = x.shape[0]
    H = w1.shape[1]
    assert tile_m % 128 == 0, "tile_m must be a multiple of the 128-lane width"

    f32 = jnp.float32
    Hp = _round_up(H, 128)                     # pad hidden to full lanes

    # --- Adaptive batch tile (all trace-time Python) -------------------------
    def _shrink(t):
        return max(128, _round_up(t // 2, 128))

    tm = tile_m
    # (a) give the "parallel" batch axis >= 2 tiles when N permits, so both
    #     v7x TensorCores get work (also cuts padding waste for small N).
    while tm > 128 and (N + tm - 1) // tm < 2:
        nt = _shrink(tm)
        if nt == tm:
            break
        tm = nt
    # (b) keep the (Hp, tm) f32 layer-1 temporary comfortably inside the
    #     scoped-VMEM default (v7x: 32 MiB scoped / 64 MiB physical per TC).
    while tm > 128 and Hp * tm * 4 > (8 << 20):
        nt = _shrink(tm)
        if nt == tm:
            break
        tm = nt

    Np = _round_up(N, tm)                      # pad batch to whole tiles

    # --- Algebraic fusion of fc2 and fc3 (exact: no activation between them) -
    #   y = -exp(h1 @ (w2 @ w3) + (b2 @ w3 + b3))
    w23 = w2.astype(f32) @ w3.astype(f32)                       # (H, 1)
    b23 = (b2.astype(f32) @ w3.astype(f32) + b3.astype(f32))    # (1, 1)

    # Zero-padded, kernel-layout parameters (padding is exact: padded hidden
    # units carry zero w1/b1/w23, so they contribute nothing to the output).
    xT   = jnp.zeros((2, Np), f32).at[:, :N].set(x.T.astype(f32))
    w1p  = jnp.zeros((2, Hp), f32).at[:, :H].set(w1.astype(f32))
    w1c0 = w1p[0, :].reshape(Hp, 1)
    w1c1 = w1p[1, :].reshape(Hp, 1)
    b1c  = jnp.zeros((Hp, 1), f32).at[:H, 0].set(b1.reshape(-1).astype(f32))
    w23c = jnp.zeros((Hp, 1), f32).at[:H, :].set(w23)
    b23s = b23.reshape(1, 1)

    grid = (Np // tm,)

    flops = 6 * Np * Hp + 2 * Np              # layer1 outer product + fused reduce
    transcendentals = Np * (Hp + 1)           # Hp tanh + 1 exp per point
    bytes_accessed = 4 * (2 * Np + Np + 4 * Hp + 1)

    out = pl.pallas_call(
        _mlp_kernel,
        out_shape=jax.ShapeDtypeStruct((1, Np), f32),
        grid=grid,
        in_specs=[
            pl.BlockSpec((2, tm), lambda i: (0, i)),     # xT tile (batch on lanes)
            pl.BlockSpec((Hp, 1), lambda i: (0, 0)),     # W1 column 0 (grid-invariant)
            pl.BlockSpec((Hp, 1), lambda i: (0, 0)),     # W1 column 1
            pl.BlockSpec((Hp, 1), lambda i: (0, 0)),     # b1
            pl.BlockSpec((Hp, 1), lambda i: (0, 0)),     # fused w23 = W2 @ w3
            pl.BlockSpec((1, 1), lambda i: (0, 0)),      # fused b23 = b2 @ w3 + b3
        ],
        out_specs=pl.BlockSpec((1, tm), lambda i: (0, i)),   # lane-dense output
        compiler_params=pltpu.CompilerParams(
            dimension_semantics=("parallel",),           # shard batch tiles across TCs
        ),
        cost_estimate=pl.CostEstimate(
            flops=flops,
            transcendentals=transcendentals,
            bytes_accessed=bytes_accessed,
        ),
    )(xT, w1c0, w1c1, b1c, w23c, b23s)

    return out[0, :N].reshape(N, 1)


def init_params(key, n_hidden):
    """Deterministic init mirroring the PyTorch module:
    xavier_normal_ on weights, PyTorch-default uniform(-1/sqrt(fan_in), ..) on
    biases.  Weights are stored as (in, out) = transpose of PyTorch's (out, in)."""
    k1, k2, k3, kb1, kb2, kb3 = jax.random.split(key, 6)

    def xavier_normal(k, fan_in, fan_out):
        std = (2.0 / (fan_in + fan_out)) ** 0.5
        return std * jax.random.normal(k, (fan_in, fan_out), dtype=jnp.float32)

    def bias_uniform(k, fan_in, fan_out):
        bound = 1.0 / (fan_in ** 0.5)
        return jax.random.uniform(
            k, (1, fan_out), dtype=jnp.float32, minval=-bound, maxval=bound
        )

    w1 = xavier_normal(k1, 2, n_hidden)
    b1 = bias_uniform(kb1, 2, n_hidden)
    w2 = xavier_normal(k2, n_hidden, n_hidden)
    b2 = bias_uniform(kb2, n_hidden, n_hidden)
    w3 = xavier_normal(k3, n_hidden, 1)
    b3 = bias_uniform(kb3, n_hidden, 1)
    return w1, b1, w2, b2, w3, b3


def reference(x, w1, b1, w2, b2, w3, b3):
    h1 = jnp.tanh(x @ w1 + b1)
    h2 = h1 @ w2 + b2
    return -jnp.exp(h2 @ w3 + b3)


if __name__ == "__main__":
    key = jax.random.PRNGKey(0)
    kx, kp = jax.random.split(key)

    N, H = 8, 32                      # small test: batch of (z, t) pairs, hidden width
    x = jax.random.normal(kx, (N, 2), dtype=jnp.float32)
    params = init_params(kp, H)

    y = matric_potential_net(x, *params)
    y = jax.block_until_ready(y)

    y_ref = reference(x, *params)
    assert y.shape == (N, 1)
    assert jnp.allclose(y, y_ref, atol=1e-5, rtol=1e-4), (y, y_ref)

    print("KERNEL_OK")
</pallas_src>

<mosaic_0001>
module attributes {stable_mosaic.version = 11 : i64} {
  func.func @_mlp_kernel(%arg0: i32, %arg1: memref<2x128xf32, #tpu.memory_space<vmem>>, %arg2: memref<128x1xf32, #tpu.memory_space<vmem>>, %arg3: memref<128x1xf32, #tpu.memory_space<vmem>>, %arg4: memref<128x1xf32, #tpu.memory_space<vmem>>, %arg5: memref<128x1xf32, #tpu.memory_space<vmem>>, %arg6: memref<1x1xf32, #tpu.memory_space<vmem>>, %arg7: memref<1x128xf32, #tpu.memory_space<vmem>>) attributes {dimension_semantics = [#tpu.dimension_semantics<parallel>], iteration_bounds = array<i64: 1>, scalar_prefetch = 0 : i64, scratch_operands = 0 : i64, tpu.core_type = #tpu.core_type<tc>, window_params = [{transform_indices = @transform_0, window_bounds = array<i64: 2, 128>}, {pipeline_mode = #tpu.pipeline_mode<synchronous>, transform_indices = @transform_1, window_bounds = array<i64: 128, 1>}, {pipeline_mode = #tpu.pipeline_mode<synchronous>, transform_indices = @transform_2, window_bounds = array<i64: 128, 1>}, {pipeline_mode = #tpu.pipeline_mode<synchronous>, transform_indices = @transform_3, window_bounds = array<i64: 128, 1>}, {pipeline_mode = #tpu.pipeline_mode<synchronous>, transform_indices = @transform_4, window_bounds = array<i64: 128, 1>}, {pipeline_mode = #tpu.pipeline_mode<synchronous>, transform_indices = @transform_5, window_bounds = array<i64: 1, 1>}, {transform_indices = @transform_6, window_bounds = array<i64: 1, 128>}]} {
    %c0 = arith.constant 0 : index
    %c0_0 = arith.constant 0 : index
    %0 = vector.load %arg1[%c0, %c0_0] : memref<2x128xf32, #tpu.memory_space<vmem>>, vector<1x128xf32>
    %c1 = arith.constant 1 : index
    %c0_1 = arith.constant 0 : index
    %1 = vector.load %arg1[%c1, %c0_1] : memref<2x128xf32, #tpu.memory_space<vmem>>, vector<1x128xf32>
    %c0_2 = arith.constant 0 : index
    %c0_3 = arith.constant 0 : index
    %2 = vector.load %arg2[%c0_2, %c0_3] : memref<128x1xf32, #tpu.memory_space<vmem>>, vector<128x1xf32>
    %3 = vector.broadcast %2 : vector<128x1xf32> to vector<128x128xf32>
    %4 = vector.broadcast %0 : vector<1x128xf32> to vector<128x128xf32>
    %5 = arith.mulf %3, %4 : vector<128x128xf32>
    %c0_4 = arith.constant 0 : index
    %c0_5 = arith.constant 0 : index
    %6 = vector.load %arg3[%c0_4, %c0_5] : memref<128x1xf32, #tpu.memory_space<vmem>>, vector<128x1xf32>
    %7 = vector.broadcast %6 : vector<128x1xf32> to vector<128x128xf32>
    %8 = vector.broadcast %1 : vector<1x128xf32> to vector<128x128xf32>
    %9 = arith.mulf %7, %8 : vector<128x128xf32>
    %10 = arith.addf %5, %9 : vector<128x128xf32>
    %c0_6 = arith.constant 0 : index
    %c0_7 = arith.constant 0 : index
    %11 = vector.load %arg4[%c0_6, %c0_7] : memref<128x1xf32, #tpu.memory_space<vmem>>, vector<128x1xf32>
    %12 = vector.broadcast %11 : vector<128x1xf32> to vector<128x128xf32>
    %13 = arith.addf %10, %12 : vector<128x128xf32>
    %14 = math.tanh %13 : vector<128x128xf32>
    %c0_8 = arith.constant 0 : index
    %c0_9 = arith.constant 0 : index
    %15 = vector.load %arg5[%c0_8, %c0_9] : memref<128x1xf32, #tpu.memory_space<vmem>>, vector<128x1xf32>
    %16 = vector.broadcast %15 : vector<128x1xf32> to vector<128x128xf32>
    %17 = arith.mulf %14, %16 : vector<128x128xf32>
    %cst = arith.constant dense<0.000000e+00> : vector<128xf32>
    %18 = vector.multi_reduction <add>, %17, %cst [0] : vector<128x128xf32> to vector<128xf32>
    %19 = vector.shape_cast %18 : vector<128xf32> to vector<1x128xf32>
    %c0_10 = arith.constant 0 : index
    %c0_11 = arith.constant 0 : index
    %20 = vector.load %arg6[%c0_10, %c0_11] : memref<1x1xf32, #tpu.memory_space<vmem>>, vector<1x1xf32>
    %21 = vector.broadcast %20 : vector<1x1xf32> to vector<1x128xf32>
    %22 = arith.addf %19, %21 : vector<1x128xf32>
    %23 = math.exp %22 : vector<1x128xf32>
    %cst_12 = arith.constant 0.000000e+00 : f32
    %24 = vector.broadcast %cst_12 : f32 to vector<1x128xf32>
    %25 = arith.subf %24, %23 : vector<1x128xf32>
    %c0_13 = arith.constant 0 : index
    %c0_14 = arith.constant 0 : index
    %26 = vector.load %arg7[%c0_13, %c0_14] : memref<1x128xf32, #tpu.memory_space<vmem>>, vector<1x128xf32>
    tpu.vector_store %arg7[%c0_13, %c0_14], %25 {strides = array<i32>} : memref<1x128xf32, #tpu.memory_space<vmem>>, vector<1x128xf32>,
    return
  }
  func.func @transform_0(%arg0: i32) -> (i32, i32) {
    %c0_i32 = arith.constant 0 : i32
    %c0_i32_0 = arith.constant 0 : i32
    return %c0_i32, %arg0 : i32, i32
  }
  func.func @transform_1(%arg0: i32) -> (i32, i32) {
    %c0_i32 = arith.constant 0 : i32
    %c0_i32_0 = arith.constant 0 : i32
    %c0_i32_1 = arith.constant 0 : i32
    return %c0_i32, %c0_i32_0 : i32, i32
  }
  func.func @transform_2(%arg0: i32) -> (i32, i32) {
    %c0_i32 = arith.constant 0 : i32
    %c0_i32_0 = arith.constant 0 : i32
    %c0_i32_1 = arith.constant 0 : i32
    return %c0_i32, %c0_i32_0 : i32, i32
  }
  func.func @transform_3(%arg0: i32) -> (i32, i32) {
    %c0_i32 = arith.constant 0 : i32
    %c0_i32_0 = arith.constant 0 : i32
    %c0_i32_1 = arith.constant 0 : i32
    return %c0_i32, %c0_i32_0 : i32, i32
  }
  func.func @transform_4(%arg0: i32) -> (i32, i32) {
    %c0_i32 = arith.constant 0 : i32
    %c0_i32_0 = arith.constant 0 : i32
    %c0_i32_1 = arith.constant 0 : i32
    return %c0_i32, %c0_i32_0 : i32, i32
  }
  func.func @transform_5(%arg0: i32) -> (i32, i32) {
    %c0_i32 = arith.constant 0 : i32
    %c0_i32_0 = arith.constant 0 : i32
    %c0_i32_1 = arith.constant 0 : i32
    return %c0_i32, %c0_i32_0 : i32, i32
  }
  func.func @transform_6(%arg0: i32) -> (i32, i32) {
    %c0_i32 = arith.constant 0 : i32
    %c0_i32_0 = arith.constant 0 : i32
    return %c0_i32, %arg0 : i32, i32
  }
}

</mosaic_0001>

<llo_original>
// kernel: matric_potential_net.1
$region0: #{matric_potential_net.1}
  #allocation0 [shape = 'u32[]', space=smem, size = 0x4, offset = 0x4, fixed_abs, tag = 'smem constant byte address 0x4 - core index']
  #allocation1 [shape = 'u32[72,128]{1,0:T(1,128)}', space=vmem, size = 0x9000, scoped, tag = 'internal scratch']
  #allocation2 [shape = 'f32[1,1]{1,0:T(1,128)S(1)}', space=vmem, size = 0x200, scoped, tag = 'scoped memory for matric_potential_net.1']
  %s0 = inlined_call_operand.vmem [shape: f32[2,128], index: 0, kind: input, shape index: {}]
  %s1 = inlined_call_operand.vmem [shape: f32[128,1], index: 1, kind: input, shape index: {}]
  %s2 = inlined_call_operand.vmem [shape: f32[128,1], index: 2, kind: input, shape index: {}]
  %s3 = inlined_call_operand.vmem [shape: f32[128,1], index: 3, kind: input, shape index: {}]
  %s4 = inlined_call_operand.vmem [shape: f32[128,1], index: 4, kind: input, shape index: {}]
  %s5 = inlined_call_operand.<no memory space> [shape: f32[1,1], index: 5, kind: input, shape index: {}]
  %s6 = inlined_call_operand.vmem [shape: f32[1,128], index: 6, kind: output, shape index: {}]
  %s7 = sld [smem:[#allocation0]]
  $region34: #{matric_potential_net.1} parent=0
    _
  %s9 = ssub.s32 1, %s7
  %s10 = scalar_select 0, %s9, %s7
  %v11 = vstv %s5
  %12 = vst [vmem:[#allocation2] sm:$0x1] %v11
  // Predicated region
  $region2: #{matric_potential_net.1} parent=0 // pred_check
    _
  $region3: #{matric_potential_net.1} parent=0 // pred_check_branch
    %14 = sbr.rel (0) target = $region5
  $region4: #{matric_potential_net.1} parent=0 // pred_region
    _
  $region5: #{matric_potential_net.1} parent=0 // pred_fallthru
    _
  // Predicated region
  $region6: #{matric_potential_net.1} parent=0 // pred_check
    _
  $region7: #{matric_potential_net.1} parent=0 // pred_check_branch
    %16 = sbr.rel (0) target = $region9
  $region8: #{matric_potential_net.1} parent=0 // pred_region
    _
  $region9: #{matric_potential_net.1} parent=0 // pred_fallthru
    _
  // Predicated region
  $region10: #{matric_potential_net.1} parent=0 // pred_check
    _
  $region11: #{matric_potential_net.1} parent=0 // pred_check_branch
    %18 = sbr.rel (0) target = $region13
  $region12: #{matric_potential_net.1} parent=0 // pred_region
    _
  $region13: #{matric_potential_net.1} parent=0 // pred_fallthru
    _
  // Predicated region
  $region14: #{matric_potential_net.1} parent=0 // pred_check
    _
  $region15: #{matric_potential_net.1} parent=0 // pred_check_branch
    %20 = sbr.rel (0) target = $region17
  $region16: #{matric_potential_net.1} parent=0 // pred_region
    _
  $region17: #{matric_potential_net.1} parent=0 // pred_fallthru
    _
  // Predicated region
  $region18: #{matric_potential_net.1} parent=0 // pred_check
    _
  $region19: #{matric_potential_net.1} parent=0 // pred_check_branch
    %22 = sbr.rel (0) target = $region21
  $region20: #{matric_potential_net.1} parent=0 // pred_region
    _
  $region21: #{matric_potential_net.1} parent=0 // pred_fallthru
    _
  // Predicated region
  $region22: #{matric_potential_net.1} parent=0 // pred_check
    _
  $region23: #{matric_potential_net.1} parent=0 // pred_check_branch
    %24 = sbr.rel (0) target = $region25
  $region24: #{matric_potential_net.1} parent=0 // pred_region
    _
  $region25: #{matric_potential_net.1} parent=0 // pred_fallthru
    _
  %v25 = vld [vmem:[%s0] sm:$0x1]
  %v26 = vld [vmem:[%s0 + $0x1] sm:$0x1]
  %v27 = vld [vmem:[%s1] sm:$0xff]
  %v28 = vld [vmem:[%s1 + $0x8] sm:$0xff]
  %v29 = vld [vmem:[%s1 + $0x10] sm:$0xff]
  %v30 = vld [vmem:[%s1 + $0x18] sm:$0xff]
  %v31 = vld [vmem:[%s1 + $0x20] sm:$0xff]
  %v32 = vld [vmem:[%s1 + $0x28] sm:$0xff]
  %v33 = vld [vmem:[%s1 + $0x30] sm:$0xff]
  %v34 = vld [vmem:[%s1 + $0x38] sm:$0xff]
  %v35 = vld [vmem:[%s1 + $0x40] sm:$0xff]
  %v36 = vld [vmem:[%s1 + $0x48] sm:$0xff]
  %v37 = vld [vmem:[%s1 + $0x50] sm:$0xff]
  %v38 = vld [vmem:[%s1 + $0x58] sm:$0xff]
  %v39 = vld [vmem:[%s1 + $0x60] sm:$0xff]
  %v40 = vld [vmem:[%s1 + $0x68] sm:$0xff]
  %v41 = vld [vmem:[%s1 + $0x70] sm:$0xff]
  %v42 = vld [vmem:[%s1 + $0x78] sm:$0xff]
  %44 = vset.pattern.permute.xlu0 0
  %45 = vperm.xlu0 %44, %v27
  %v46 = vpop.permute.xlu0 %45
  %49 = vset.pattern.permute.xlu0 0
  %50 = vperm.xlu0 %49, %v28
  %v51 = vpop.permute.xlu0 %50
  %54 = vset.pattern.permute.xlu0 0
  %55 = vperm.xlu0 %54, %v29
  %v56 = vpop.permute.xlu0 %55
  %59 = vset.pattern.permute.xlu0 0
  %60 = vperm.xlu0 %59, %v30
  %v61 = vpop.permute.xlu0 %60
  %64 = vset.pattern.permute.xlu0 0
  %65 = vperm.xlu0 %64, %v31
  %v66 = vpop.permute.xlu0 %65
  %69 = vset.pattern.permute.xlu0 0
  %70 = vperm.xlu0 %69, %v32
  %v71 = vpop.permute.xlu0 %70
  %74 = vset.pattern.permute.xlu0 0
  %75 = vperm.xlu0 %74, %v33
  %v76 = vpop.permute.xlu0 %75
  %79 = vset.pattern.permute.xlu0 0
  %80 = vperm.xlu0 %79, %v34
  %v81 = vpop.permute.xlu0 %80
  %84 = vset.pattern.permute.xlu0 0
  %85 = vperm.xlu0 %84, %v35
  %v86 = vpop.permute.xlu0 %85
  %89 = vset.pattern.permute.xlu0 0
  %90 = vperm.xlu0 %89, %v36
  %v91 = vpop.permute.xlu0 %90
  %94 = vset.pattern.permute.xlu0 0
  %95 = vperm.xlu0 %94, %v37
  %v96 = vpop.permute.xlu0 %95
  %99 = vset.pattern.permute.xlu0 0
  %100 = vperm.xlu0 %99, %v38
  %v101 = vpop.permute.xlu0 %100
  %104 = vset.pattern.permute.xlu0 0
  %105 = vperm.xlu0 %104, %v39
  %v106 = vpop.permute.xlu0 %105
  %109 = vset.pattern.permute.xlu0 0
  %110 = vperm.xlu0 %109, %v40
  %v111 = vpop.permute.xlu0 %110
  %114 = vset.pattern.permute.xlu0 0
  %115 = vperm.xlu0 %114, %v41
  %v116 = vpop.permute.xlu0 %115
  %119 = vset.pattern.permute.xlu0 0
  %120 = vperm.xlu0 %119, %v42
  %v121 = vpop.permute.xlu0 %120
  %v123 = vperm.slane %v25, 0
  %v124 = vmul.f32 %v46, %v123
  %v125 = vmul.f32 %v51, %v123
  %v126 = vmul.f32 %v56, %v123
  %v127 = vmul.f32 %v61, %v123
  %v128 = vmul.f32 %v66, %v123
  %v129 = vmul.f32 %v71, %v123
  %v130 = vmul.f32 %v76, %v123
  %v131 = vmul.f32 %v81, %v123
  %v132 = vmul.f32 %v86, %v123
  %v133 = vmul.f32 %v91, %v123
  %v134 = vmul.f32 %v96, %v123
  %v135 = vmul.f32 %v101, %v123
  %v136 = vmul.f32 %v106, %v123
  %v137 = vmul.f32 %v111, %v123
  %v138 = vmul.f32 %v116, %v123
  %v139 = vmul.f32 %v121, %v123
  %v140 = vld [vmem:[%s2] sm:$0xff]
  %v141 = vld [vmem:[%s2 + $0x8] sm:$0xff]
  %v142 = vld [vmem:[%s2 + $0x10] sm:$0xff]
  %v143 = vld [vmem:[%s2 + $0x18] sm:$0xff]
  %v144 = vld [vmem:[%s2 + $0x20] sm:$0xff]
  %v145 = vld [vmem:[%s2 + $0x28] sm:$0xff]
  %v146 = vld [vmem:[%s2 + $0x30] sm:$0xff]
  %v147 = vld [vmem:[%s2 + $0x38] sm:$0xff]
  %v148 = vld [vmem:[%s2 + $0x40] sm:$0xff]
  %v149 = vld [vmem:[%s2 + $0x48] sm:$0xff]
  %v150 = vld [vmem:[%s2 + $0x50] sm:$0xff]
  %v151 = vld [vmem:[%s2 + $0x58] sm:$0xff]
  %v152 = vld [vmem:[%s2 + $0x60] sm:$0xff]
  %v153 = vld [vmem:[%s2 + $0x68] sm:$0xff]
  %v154 = vld [vmem:[%s2 + $0x70] sm:$0xff]
  %v155 = vld [vmem:[%s2 + $0x78] sm:$0xff]
  %157 = vset.pattern.permute.xlu0 0
  %158 = vperm.xlu0 %157, %v140
  %v159 = vpop.permute.xlu0 %158
  %162 = vset.pattern.permute.xlu0 0
  %163 = vperm.xlu0 %162, %v141
  %v164 = vpop.permute.xlu0 %163
  %167 = vset.pattern.permute.xlu0 0
  %168 = vperm.xlu0 %167, %v142
  %v169 = vpop.permute.xlu0 %168
  %172 = vset.pattern.permute.xlu0 0
  %173 = vperm.xlu0 %172, %v143
  %v174 = vpop.permute.xlu0 %173
  %177 = vset.pattern.permute.xlu0 0
  %178 = vperm.xlu0 %177, %v144
  %v179 = vpop.permute.xlu0 %178
  %182 = vset.pattern.permute.xlu0 0
  %183 = vperm.xlu0 %182, %v145
  %v184 = vpop.permute.xlu0 %183
  %187 = vset.pattern.permute.xlu0 0
  %188 = vperm.xlu0 %187, %v146
  %v189 = vpop.permute.xlu0 %188
  %192 = vset.pattern.permute.xlu0 0
  %193 = vperm.xlu0 %192, %v147
  %v194 = vpop.permute.xlu0 %193
  %197 = vset.pattern.permute.xlu0 0
  %198 = vperm.xlu0 %197, %v148
  %v199 = vpop.permute.xlu0 %198
  %202 = vset.pattern.permute.xlu0 0
  %203 = vperm.xlu0 %202, %v149
  %v204 = vpop.permute.xlu0 %203
  %207 = vset.pattern.permute.xlu0 0
  %208 = vperm.xlu0 %207, %v150
  %v209 = vpop.permute.xlu0 %208
  %212 = vset.pattern.permute.xlu0 0
  %213 = vperm.xlu0 %212, %v151
  %v214 = vpop.permute.xlu0 %213
  %217 = vset.pattern.permute.xlu0 0
  %218 = vperm.xlu0 %217, %v152
  %v219 = vpop.permute.xlu0 %218
  %222 = vset.pattern.permute.xlu0 0
  %223 = vperm.xlu0 %222, %v153
  %v224 = vpop.permute.xlu0 %223
  %227 = vset.pattern.permute.xlu0 0
  %228 = vperm.xlu0 %227, %v154
  %v229 = vpop.permute.xlu0 %228
  %232 = vset.pattern.permute.xlu0 0
  %233 = vperm.xlu0 %232, %v155
  %v234 = vpop.permute.xlu0 %233
  %v236 = vperm.slane %v26, 0
  %v237 = vmul.f32 %v159, %v236
  %v238 = vmul.f32 %v164, %v236
  %v239 = vmul.f32 %v169, %v236
  %v240 = vmul.f32 %v174, %v236
  %v241 = vmul.f32 %v179, %v236
  %v242 = vmul.f32 %v184, %v236
  %v243 = vmul.f32 %v189, %v236
  %v244 = vmul.f32 %v194, %v236
  %v245 = vmul.f32 %v199, %v236
  %v246 = vmul.f32 %v204, %v236
  %v247 = vmul.f32 %v209, %v236
  %v248 = vmul.f32 %v214, %v236
  %v249 = vmul.f32 %v219, %v236
  %v250 = vmul.f32 %v224, %v236
  %v251 = vmul.f32 %v229, %v236
  %v252 = vmul.f32 %v234, %v236
  %v253 = vadd.f32 %v124, %v237
  %v254 = vadd.f32 %v125, %v238
  %v255 = vadd.f32 %v126, %v239
  %v256 = vadd.f32 %v127, %v240
  %v257 = vadd.f32 %v128, %v241
  %v258 = vadd.f32 %v129, %v242
  %v259 = vadd.f32 %v130, %v243
  %v260 = vadd.f32 %v131, %v244
  %v261 = vadd.f32 %v132, %v245
  %v262 = vadd.f32 %v133, %v246
  %v263 = vadd.f32 %v134, %v247
  %v264 = vadd.f32 %v135, %v248
  %v265 = vadd.f32 %v136, %v249
  %v266 = vadd.f32 %v137, %v250
  %v267 = vadd.f32 %v138, %v251
  %v268 = vadd.f32 %v139, %v252
  %v269 = vld [vmem:[%s3] sm:$0xff]
  %v270 = vld [vmem:[%s3 + $0x8] sm:$0xff]
  %v271 = vld [vmem:[%s3 + $0x10] sm:$0xff]
  %v272 = vld [vmem:[%s3 + $0x18] sm:$0xff]
  %v273 = vld [vmem:[%s3 + $0x20] sm:$0xff]
  %v274 = vld [vmem:[%s3 + $0x28] sm:$0xff]
  %v275 = vld [vmem:[%s3 + $0x30] sm:$0xff]
  %v276 = vld [vmem:[%s3 + $0x38] sm:$0xff]
  %v277 = vld [vmem:[%s3 + $0x40] sm:$0xff]
  %v278 = vld [vmem:[%s3 + $0x48] sm:$0xff]
  %v279 = vld [vmem:[%s3 + $0x50] sm:$0xff]
  %v280 = vld [vmem:[%s3 + $0x58] sm:$0xff]
  %v281 = vld [vmem:[%s3 + $0x60] sm:$0xff]
  %v282 = vld [vmem:[%s3 + $0x68] sm:$0xff]
  %v283 = vld [vmem:[%s3 + $0x70] sm:$0xff]
  %v284 = vld [vmem:[%s3 + $0x78] sm:$0xff]
  %286 = vset.pattern.permute.xlu0 0
  %287 = vperm.xlu0 %286, %v269
  %v288 = vpop.permute.xlu0 %287
  %291 = vset.pattern.permute.xlu0 0
  %292 = vperm.xlu0 %291, %v270
  %v293 = vpop.permute.xlu0 %292
  %296 = vset.pattern.permute.xlu0 0
  %297 = vperm.xlu0 %296, %v271
  %v298 = vpop.permute.xlu0 %297
  %301 = vset.pattern.permute.xlu0 0
  %302 = vperm.xlu0 %301, %v272
  %v303 = vpop.permute.xlu0 %302
  %306 = vset.pattern.permute.xlu0 0
  %307 = vperm.xlu0 %306, %v273
  %v308 = vpop.permute.xlu0 %307
  %311 = vset.pattern.permute.xlu0 0
  %312 = vperm.xlu0 %311, %v274
  %v313 = vpop.permute.xlu0 %312
  %316 = vset.pattern.permute.xlu0 0
  %317 = vperm.xlu0 %316, %v275
  %v318 = vpop.permute.xlu0 %317
  %321 = vset.pattern.permute.xlu0 0
  %322 = vperm.xlu0 %321, %v276
  %v323 = vpop.permute.xlu0 %322
  %326 = vset.pattern.permute.xlu0 0
  %327 = vperm.xlu0 %326, %v277
  %v328 = vpop.permute.xlu0 %327
  %331 = vset.pattern.permute.xlu0 0
  %332 = vperm.xlu0 %331, %v278
  %v333 = vpop.permute.xlu0 %332
  %336 = vset.pattern.permute.xlu0 0
  %337 = vperm.xlu0 %336, %v279
  %v338 = vpop.permute.xlu0 %337
  %341 = vset.pattern.permute.xlu0 0
  %342 = vperm.xlu0 %341, %v280
  %v343 = vpop.permute.xlu0 %342
  %346 = vset.pattern.permute.xlu0 0
  %347 = vperm.xlu0 %346, %v281
  %v348 = vpop.permute.xlu0 %347
  %351 = vset.pattern.permute.xlu0 0
  %352 = vperm.xlu0 %351, %v282
  %v353 = vpop.permute.xlu0 %352
  %356 = vset.pattern.permute.xlu0 0
  %357 = vperm.xlu0 %356, %v283
  %v358 = vpop.permute.xlu0 %357
  %361 = vset.pattern.permute.xlu0 0
  %362 = vperm.xlu0 %361, %v284
  %v363 = vpop.permute.xlu0 %362
  %v365 = vadd.f32 %v253, %v288
  %v366 = vadd.f32 %v254, %v293
  %v367 = vadd.f32 %v255, %v298
  %v368 = vadd.f32 %v256, %v303
  %v369 = vadd.f32 %v257, %v308
  %v370 = vadd.f32 %v258, %v313
  %v371 = vadd.f32 %v259, %v318
  %v372 = vadd.f32 %v260, %v323
  %v373 = vadd.f32 %v261, %v328
  %v374 = vadd.f32 %v262, %v333
  %v375 = vadd.f32 %v263, %v338
  %v376 = vadd.f32 %v264, %v343
  %v377 = vadd.f32 %v265, %v348
  %v378 = vadd.f32 %v266, %v353
  %v379 = vadd.f32 %v267, %v358
  %v380 = vadd.f32 %v268, %v363
  %v381 = vtanh.pop %v365
  %v382 = vtanh.pop %v366
  %v383 = vtanh.pop %v367
  %v384 = vtanh.pop %v368
  %v385 = vtanh.pop %v369
  %v386 = vtanh.pop %v370
  %v387 = vtanh.pop %v371
  %v388 = vtanh.pop %v372
  %v389 = vtanh.pop %v373
  %v390 = vtanh.pop %v374
  %v391 = vtanh.pop %v375
  %v392 = vtanh.pop %v376
  %v393 = vtanh.pop %v377
  %v394 = vtanh.pop %v378
  %v395 = vtanh.pop %v379
  %v396 = vtanh.pop %v380
  %v397 = vld [vmem:[%s4] sm:$0xff]
  %v398 = vld [vmem:[%s4 + $0x8] sm:$0xff]
  %v399 = vld [vmem:[%s4 + $0x10] sm:$0xff]
  %v400 = vld [vmem:[%s4 + $0x18] sm:$0xff]
  %v401 = vld [vmem:[%s4 + $0x20] sm:$0xff]
  %v402 = vld [vmem:[%s4 + $0x28] sm:$0xff]
  %v403 = vld [vmem:[%s4 + $0x30] sm:$0xff]
  %v404 = vld [vmem:[%s4 + $0x38] sm:$0xff]
  %v405 = vld [vmem:[%s4 + $0x40] sm:$0xff]
  %v406 = vld [vmem:[%s4 + $0x48] sm:$0xff]
  %v407 = vld [vmem:[%s4 + $0x50] sm:$0xff]
  %v408 = vld [vmem:[%s4 + $0x58] sm:$0xff]
  %v409 = vld [vmem:[%s4 + $0x60] sm:$0xff]
  %v410 = vld [vmem:[%s4 + $0x68] sm:$0xff]
  %v411 = vld [vmem:[%s4 + $0x70] sm:$0xff]
  %v412 = vld [vmem:[%s4 + $0x78] sm:$0xff]
  %414 = vset.pattern.permute.xlu0 0
  %415 = vperm.xlu0 %414, %v397
  %v416 = vpop.permute.xlu0 %415
  %419 = vset.pattern.permute.xlu0 0
  %420 = vperm.xlu0 %419, %v398
  %v421 = vpop.permute.xlu0 %420
  %424 = vset.pattern.permute.xlu0 0
  %425 = vperm.xlu0 %424, %v399
  %v426 = vpop.permute.xlu0 %425
  %429 = vset.pattern.permute.xlu0 0
  %430 = vperm.xlu0 %429, %v400
  %v431 = vpop.permute.xlu0 %430
  %434 = vset.pattern.permute.xlu0 0
  %435 = vperm.xlu0 %434, %v401
  %v436 = vpop.permute.xlu0 %435
  %439 = vset.pattern.permute.xlu0 0
  %440 = vperm.xlu0 %439, %v402
  %v441 = vpop.permute.xlu0 %440
  %444 = vset.pattern.permute.xlu0 0
  %445 = vperm.xlu0 %444, %v403
  %v446 = vpop.permute.xlu0 %445
  %449 = vset.pattern.permute.xlu0 0
  %450 = vperm.xlu0 %449, %v404
  %v451 = vpop.permute.xlu0 %450
  %454 = vset.pattern.permute.xlu0 0
  %455 = vperm.xlu0 %454, %v405
  %v456 = vpop.permute.xlu0 %455
  %459 = vset.pattern.permute.xlu0 0
  %460 = vperm.xlu0 %459, %v406
  %v461 = vpop.permute.xlu0 %460
  %464 = vset.pattern.permute.xlu0 0
  %465 = vperm.xlu0 %464, %v407
  %v466 = vpop.permute.xlu0 %465
  %469 = vset.pattern.permute.xlu0 0
  %470 = vperm.xlu0 %469, %v408
  %v471 = vpop.permute.xlu0 %470
  %474 = vset.pattern.permute.xlu0 0
  %475 = vperm.xlu0 %474, %v409
  %v476 = vpop.permute.xlu0 %475
  %479 = vset.pattern.permute.xlu0 0
  %480 = vperm.xlu0 %479, %v410
  %v481 = vpop.permute.xlu0 %480
  %484 = vset.pattern.permute.xlu0 0
  %485 = vperm.xlu0 %484, %v411
  %v486 = vpop.permute.xlu0 %485
  %489 = vset.pattern.permute.xlu0 0
  %490 = vperm.xlu0 %489, %v412
  %v491 = vpop.permute.xlu0 %490
  %v493 = vmul.f32 %v381, %v416
  %v494 = vmul.f32 %v382, %v421
  %v495 = vmul.f32 %v383, %v426
  %v496 = vmul.f32 %v384, %v431
  %v497 = vmul.f32 %v385, %v436
  %v498 = vmul.f32 %v386, %v441
  %v499 = vmul.f32 %v387, %v446
  %v500 = vmul.f32 %v388, %v451
  %v501 = vmul.f32 %v389, %v456
  %v502 = vmul.f32 %v390, %v461
  %v503 = vmul.f32 %v391, %v466
  %v504 = vmul.f32 %v392, %v471
  %v505 = vmul.f32 %v393, %v476
  %v506 = vmul.f32 %v394, %v481
  %v507 = vmul.f32 %v395, %v486
  %v508 = vmul.f32 %v396, %v491
  %v509 = vadd.f32 %v493, %v494
  %v510 = vadd.f32 %v509, %v495
  %v511 = vadd.f32 %v510, %v496
  %v512 = vadd.f32 %v511, %v497
  %v513 = vadd.f32 %v512, %v498
  %v514 = vadd.f32 %v513, %v499
  %v515 = vadd.f32 %v514, %v500
  %v516 = vadd.f32 %v515, %v501
  %v517 = vadd.f32 %v516, %v502
  %v518 = vadd.f32 %v517, %v503
  %v519 = vadd.f32 %v518, %v504
  %v520 = vadd.f32 %v519, %v505
  %v521 = vadd.f32 %v520, %v506
  %v522 = vadd.f32 %v521, %v507
  %v523 = vadd.f32 %v522, %v508
  %v524 = vrot.slane %v523, 4
  %v525 = vadd.f32 %v523, %v524
  %v526 = vrot.slane %v525, 2
  %v527 = vadd.f32 %v525, %v526
  %v528 = vrot.slane %v527, 1
  %v529 = vadd.f32 %v527, %v528
  %v530 = vld [vmem:[#allocation2] sm:$0x1]
  %532 = vset.pattern.permute.xlu0 0
  %533 = vperm.xlu0 %532, %v530
  %v534 = vpop.permute.xlu0 %533
  %v536 = vperm.slane %v534, 0
  %v537 = vadd.f32 %v529, %v536
  %v538 = vmul.f32 %v537, 1.442695
  %v539 = vpow.pop %v538
  %v540 = vsub.f32 0.0, %v539
  %541 = vst [vmem:[%s6] sm:$0x1] %v540
  // Predicated region
  $region26: #{matric_potential_net.1} parent=0 // pred_check
    _
  $region27: #{matric_potential_net.1} parent=0 // pred_check_branch
    %543 = sbr.rel (0) target = $region29
  $region28: #{matric_potential_net.1} parent=0 // pred_region
    _
  $region29: #{matric_potential_net.1} parent=0 // pred_fallthru
    _
  // Predicated region
  $region30: #{matric_potential_net.1} parent=0 // pred_check
    _
  $region31: #{matric_potential_net.1} parent=0 // pred_check_branch
    %545 = sbr.rel (0) target = $region33
  $region32: #{matric_potential_net.1} parent=0 // pred_region
    _
  $region33: #{matric_potential_net.1} parent=0 // pred_fallthru
    _

</llo_original>
